<compile_context>
chip_gen: v5e
topology: v5e:2x2
jax: 0.10.0
libtpu: 0.0.40
codegen_flags: <defaults>
</compile_context>

<pallas_src>
import jax
import jax.numpy as jnp
from jax.experimental import pallas as pl
from jax.experimental.pallas import tpu as pltpu

EPSILON = 1e-6  # matches self.epsilon = 1e-06 in the PyTorch module


def _awl_kernel(params_ref, losses_ref, out_ref):
    # params_ref: (1, num) f32 in VMEM (sublane 0 of its own ref).
    # losses_ref: (1, num) f32 in VMEM.
    # out_ref:    (1, 1)   f32 in SMEM (scalar result).
    p = params_ref[...]                    # (1, num)
    l = losses_ref[...]                    # (1, num)
    p2 = p * p
    inv = pl.reciprocal(p2 + EPSILON, approx=False)   # exact 1/x, keeps 1e-5 tol
    term = 0.5 * inv * l + jnp.log1p(p2)              # log1p: fewer VALU ops, better acc
    out_ref[0, 0] = jnp.sum(term)


def automatic_weighted_loss(params, losses):
    """params: (num,) learnable weights; losses: (num,) task losses.

    Returns a scalar f32 identical to AutomaticWeightedLoss.forward(*losses).
    """
    num = params.shape[0]
    # Two separate inputs -> no wrapper-side concat / extra HBM round trip.
    # reshape to (1, num) is metadata-only (battle-tested 2-D VMEM layout).
    p2d = params.astype(jnp.float32).reshape(1, num)
    l2d = losses.astype(jnp.float32).reshape(1, num)

    out = pl.pallas_call(
        _awl_kernel,
        out_shape=jax.ShapeDtypeStruct((1, 1), jnp.float32),
        in_specs=[
            pl.BlockSpec(memory_space=pltpu.MemorySpace.VMEM),
            pl.BlockSpec(memory_space=pltpu.MemorySpace.VMEM),
        ],
        out_specs=pl.BlockSpec(memory_space=pltpu.MemorySpace.SMEM),
    )(p2d, l2d)
    return out[0, 0]


def _reference(params, losses):
    p2 = params.astype(jnp.float32) ** 2
    return jnp.sum(
        0.5 / (p2 + EPSILON) * losses.astype(jnp.float32) + jnp.log1p(p2)
    )


if __name__ == "__main__":
    num = 2  # matches AutomaticWeightedLoss(num=2)

    # Deterministic parameter init: torch.ones(num) in the reference module.
    params = jnp.ones((num,), dtype=jnp.float32)

    # Deterministic example task losses (scalars in the PyTorch usage).
    key = jax.random.PRNGKey(0)
    losses = jax.random.uniform(
        key, (num,), dtype=jnp.float32, minval=0.5, maxval=3.0
    )

    out = automatic_weighted_loss(params, losses)
    out = jax.block_until_ready(out)

    ref = _reference(params, losses)
    assert jnp.allclose(out, ref, rtol=1e-5, atol=1e-5), (out, ref)

    print("KERNEL_OK")
</pallas_src>

<mosaic_0001>
module attributes {stable_mosaic.version = 11 : i64} {
  func.func @_awl_kernel(%arg0: memref<1x2xf32, #tpu.memory_space<vmem>>, %arg1: memref<1x2xf32, #tpu.memory_space<vmem>>, %arg2: memref<1x1xf32, #tpu.memory_space<smem>>) attributes {dimension_semantics = [], scalar_prefetch = 0 : i64, scratch_operands = 0 : i64, tpu.core_type = #tpu.core_type<tc>} {
    %c0 = arith.constant 0 : index
    %c0_0 = arith.constant 0 : index
    %0 = vector.load %arg0[%c0, %c0_0] : memref<1x2xf32, #tpu.memory_space<vmem>>, vector<1x2xf32>
    %c0_1 = arith.constant 0 : index
    %c0_2 = arith.constant 0 : index
    %1 = vector.load %arg1[%c0_1, %c0_2] : memref<1x2xf32, #tpu.memory_space<vmem>>, vector<1x2xf32>
    %2 = arith.mulf %0, %0 : vector<1x2xf32>
    %cst = arith.constant 9.99999997E-7 : f32
    %3 = vector.broadcast %cst : f32 to vector<1x2xf32>
    %4 = arith.addf %2, %3 : vector<1x2xf32>
    %5 = tpu.reciprocal %4 : vector<1x2xf32> -> vector<1x2xf32>
    %cst_3 = arith.constant 5.000000e-01 : f32
    %6 = vector.broadcast %cst_3 : f32 to vector<1x2xf32>
    %7 = arith.mulf %6, %5 : vector<1x2xf32>
    %8 = arith.mulf %7, %1 : vector<1x2xf32>
    %9 = math.log1p %2 : vector<1x2xf32>
    %10 = arith.addf %8, %9 : vector<1x2xf32>
    %11 = vector.shape_cast %10 : vector<1x2xf32> to vector<1x1x2xf32>
    %cst_4 = arith.constant dense<0.000000e+00> : vector<1xf32>
    %12 = vector.multi_reduction <add>, %11, %cst_4 [1, 2] : vector<1x1x2xf32> to vector<1xf32>
    %13 = vector.shape_cast %12 : vector<1xf32> to vector<1x1x1xf32>
    %14 = vector.extract %13[0, 0, 0] : f32 from vector<1x1x1xf32>
    %c0_5 = arith.constant 0 : index
    %c0_6 = arith.constant 0 : index
    %15 = memref.load %arg2[%c0_5, %c0_6] : memref<1x1xf32, #tpu.memory_space<smem>>
    memref.store %14, %arg2[%c0_5, %c0_6] : memref<1x1xf32, #tpu.memory_space<smem>>
    return
  }
}

</mosaic_0001>

<llo_original>
// kernel: tpu_custom_call.1
$region0: #{tpu_custom_call.1}
  #allocation0 [shape = 'u32[]', space=smem, size = 0x4, offset = 0x4, fixed_abs, tag = 'smem constant byte address 0x4 - core index']
  #allocation1 [shape = 'u32[72,128]{1,0:T(1,128)}', space=vmem, size = 0x9000, scoped, tag = 'internal scratch']
  %s0 = inlined_call_operand.hbm [shape: f32[1,2], index: 0, kind: input, shape index: {}]
  %s1 = inlined_call_operand.hbm [shape: f32[1,2], index: 1, kind: input, shape index: {}]
  %s2 = inlined_call_operand.hbm [shape: f32[1,1], index: 2, kind: output, shape index: {}]
  %s3 = sld [smem:[#allocation0]]
  $region26: #{tpu_custom_call.1} parent=0
    _
  %s5 = ssub.s32 1, %s3
  %s6 = scalar_select 0, %s5, %s3
  $region1: #{tpu_custom_call.1} parent=0
    #allocation2 [shape = 'u8[512]{0}', space=vmem, size = 0x400, scoped, tag = 'input window, operand 0, single buffered']
    #allocation3 [shape = 's32[1]{0}', space=sflag, size = 0x4, scoped, tag = 'scoped memory for tpu_custom_call.1']
    #allocation4 [shape = 's32[1]{0}', space=sflag, size = 0x4, scoped, tag = 'scoped memory for tpu_custom_call.1']
    #allocation5 [shape = 'u8[512]{0}', space=vmem, size = 0x400, scoped, tag = 'input window, operand 1, single buffered']
    #allocation6 [shape = 's32[1]{0}', space=sflag, size = 0x4, scoped, tag = 'scoped memory for tpu_custom_call.1']
    #allocation7 [shape = 'u8[512]{0}', space=smem, size = 0x200, scoped, tag = 'output window, operand 0, single buffered']
    %7 = vsyncpa [#allocation3], 0
    %8 = vsyncpa [#allocation6], 0
    %9 = vsyncpa [#allocation4], 0
    // Predicated region
    $region2: #{tpu_custom_call.1} parent=1 // pred_check
      _
    $region3: #{tpu_custom_call.1} parent=1 // pred_check_branch
      %11 = sbr.rel (0) target = $region5
    $region4: #{tpu_custom_call.1} parent=1 // pred_region
      %13 = vsyncadd [#allocation3], 0
      %s15 = sshll.u32 %s0, 4
      %s16 = int_to_ptr.hbm [resolvable:$true] %s15
      %s17 = sshll.u32 [#allocation2], 4
      %s18 = int_to_ptr.vmem [resolvable:$true] %s17
      %20 = dma.hbm_to_vmem [thread:$0]  %s16, 16, %s18, [#allocation3]
    $region5: #{tpu_custom_call.1} parent=1 // pred_fallthru
      _
    // Predicated region
    $region6: #{tpu_custom_call.1} parent=1 // pred_check
      _
    $region7: #{tpu_custom_call.1} parent=1 // pred_check_branch
      %22 = sbr.rel (0) target = $region9
    $region8: #{tpu_custom_call.1} parent=1 // pred_region
      %24 = vsyncadd [#allocation6], 0
      %s26 = sshll.u32 %s1, 4
      %s27 = int_to_ptr.hbm [resolvable:$true] %s26
      %s28 = sshll.u32 [#allocation5], 4
      %s29 = int_to_ptr.vmem [resolvable:$true] %s28
      %31 = dma.hbm_to_vmem [thread:$0]  %s27, 16, %s29, [#allocation6]
    $region9: #{tpu_custom_call.1} parent=1 // pred_fallthru
      _
    // Predicated region
    $region10: #{tpu_custom_call.1} parent=1 // pred_check
      _
    $region11: #{tpu_custom_call.1} parent=1 // pred_check_branch
      %33 = sbr.rel (0) target = $region13
    $region12: #{tpu_custom_call.1} parent=1 // pred_region
      %35 = dma.done [#allocation3], 16
    $region13: #{tpu_custom_call.1} parent=1 // pred_fallthru
      _
    // Predicated region
    $region14: #{tpu_custom_call.1} parent=1 // pred_check
      _
    $region15: #{tpu_custom_call.1} parent=1 // pred_check_branch
      %37 = sbr.rel (0) target = $region17
    $region16: #{tpu_custom_call.1} parent=1 // pred_region
      %39 = dma.done [#allocation6], 16
    $region17: #{tpu_custom_call.1} parent=1 // pred_fallthru
      _
    %v40 = vld [vmem:[#allocation2] sm:$0x1]
    %v41 = vld [vmem:[#allocation5] sm:$0x1]
    %v42 = vmul.f32 %v40, %v40
    %v43 = vadd.f32 %v42, 1e-06
    %v44 = vrcp.pop %v43
    %v45 = vmul.f32 %v43, %v44
    %v46 = vsub.f32 1.0, %v45
    %v47 = vmul.f32 %v44, %v46
    %v48 = vadd.f32 %v44, %v47
    %vm49 = vweird.f32 %v43
    %vm50 = vweird.f32 %v44
    %vm51 = vmor %vm49, %vm50
    %v52 = vsel %vm51, %v44, %v48
    %v53 = vand.u32 2147483647, %v43
    %vm54 = vcmp.eq.f32.partialorder %v53, 8.507059e+37
    %v55 = vand.u32 %v43, 2147483648
    %v56 = vor.u32 1.1754944e-38, %v55
    %v57 = vsel %vm54, %v56, %v52
    %v58 = vmul.f32 %v57, 0.5
    %v59 = vmul.f32 %v58, %v41
    %v60 = vadd.f32 %v42, 1.0
    %v61 = vlog2.pop %v60
    %v62 = vmul.f32 %v61, 0.6931472
    %v63 = vmul.f32 -0.5, %v42
    %v64 = vadd.f32 %v63, 1.0
    %v65 = vmul.f32 %v64, %v42
    %v66 = vand.u32 2147483647, %v42
    %vm67 = vcmp.lt.f32.partialorder %v66, 0.0004427343
    %v68 = vsel %vm67, %v65, %v62
    %v69 = vadd.f32 %v59, %v68
    %vm70 = vcmask 8192
    %v71 = vsel %vm70, %v69, 0.0
    %72 = vadd.xlane.f32.xlu0 %v71
    %v73 = vpop.xlane.xlu0 %72
    %v74 = vrot.slane %v73, 4
    %v75 = vadd.f32 %v73, %v74
    %v76 = vrot.slane %v75, 2
    %v77 = vadd.f32 %v75, %v76
    %v78 = vrot.slane %v77, 1
    %v79 = vadd.f32 %v77, %v78
    %s80 = vtos %v79
    %s81 = scalar_lea.smem [#allocation7], 0
    %82 = sst [smem:[%s81]] %s80
    // Predicated region
    $region18: #{tpu_custom_call.1} parent=1 // pred_check
      _
    $region19: #{tpu_custom_call.1} parent=1 // pred_check_branch
      %84 = sbr.rel (0) target = $region21
    $region20: #{tpu_custom_call.1} parent=1 // pred_region
      %86 = vsyncadd [#allocation4], 0
      %s88 = sshll.u32 %s2, 4
      %s89 = int_to_ptr.hbm [resolvable:$true] %s88
      %91 = dma.smem_to_hbm [#allocation7], 16, %s89, [#allocation4]
    $region21: #{tpu_custom_call.1} parent=1 // pred_fallthru
      _
    // Predicated region
    $region22: #{tpu_custom_call.1} parent=1 // pred_check
      _
    $region23: #{tpu_custom_call.1} parent=1 // pred_check_branch
      %93 = sbr.rel (0) target = $region25
    $region24: #{tpu_custom_call.1} parent=1 // pred_region
      %95 = dma.done [#allocation4], 16
    $region25: #{tpu_custom_call.1} parent=1 // pred_fallthru
      _
    %96 = sfence
    %97 = vsyncpa [#allocation3], 1
    %98 = vsyncpa [#allocation6], 1
    %99 = vsyncpa [#allocation4], 1

</llo_original>
